<compile_context>
chip_gen: v6e
topology: v6e:2x2x1
jax: 0.10.0
libtpu: 0.0.40
codegen_flags: <defaults>
</compile_context>

<pallas_src>
import functools

import jax
import jax.numpy as jnp
import numpy as np
from jax.experimental import pallas as pl
from jax.experimental.pallas import tpu as pltpu


def _round_up(v, m):
    return (v + m - 1) // m * m


def _make_rvq_kernel(n_q, tm, kp):
    """Fused multi-stage RVQ kernel for one (TM, D) row tile."""

    def kernel(x_ref, cb_ref, c2h_ref, xhat_ref, idx_ref, err_ref):
        # x_ref   : (TM, D)  f32   input rows (residual of stage 0)
        # cb_ref  : (n, D, Kp)     stacked codebooks (VMEM-resident)
        # c2h_ref : (n, 1, Kp)     precomputed 0.5*||C||^2 (padded codes huge)
        # xhat_ref: (TM, D)  f32   sum of dequantized vectors (out)
        # idx_ref : (TM, n)  i32   chosen code per stage (out)
        # err_ref : (TM, 1)  f32   per-row squared-error sum over stages (out)
        r = x_ref[...]                                        # (TM, D)
        row_err = jnp.zeros((tm, 1), jnp.float32)

        for q in range(n_q):                                  # unrolled (small)
            cb = cb_ref[q]                                    # (D, Kp)
            c2h = c2h_ref[q]                                  # (1, Kp)

            # Argmin key: 0.5*||c||^2 - r.c  (== 0.5*(dist - ||r||^2)).
            scores = jnp.dot(r, cb, preferred_element_type=jnp.float32)
            key = c2h - scores                                # (TM, Kp)

            # argmin with first-occurrence tie-break (matches torch.min).
            lane = jax.lax.broadcasted_iota(jnp.int32, key.shape, 1)
            min_k = jnp.min(key, axis=-1, keepdims=True)
            idx = jnp.min(jnp.where(key == min_k, lane, kp), axis=-1,
                          keepdims=True)                      # (TM, 1) i32

            # Dequantize via one-hot contraction with the (D, Kp) codebook:
            # NT matmul (contract on Kp of both), no transposed copy needed.
            onehot = (lane == idx).astype(jnp.float32)        # (TM, Kp)
            xq = jax.lax.dot_general(
                onehot, cb, (((1,), (1,)), ((), ())),
                preferred_element_type=jnp.float32)           # (TM, D)

            r = r - xq
            # (xq - r_old)^2 == r_new^2, so accumulate sum(r*r) per row.
            row_err = row_err + jnp.sum(r * r, axis=-1, keepdims=True)

            # Store this stage's index column directly (no select chain).
            idx_ref[:, q:q + 1] = idx

        # x_hat = sum_q xq = x - r_final.
        xhat_ref[...] = x_ref[...] - r
        err_ref[...] = row_err

    return kernel


@functools.partial(jax.jit, static_argnames=("block_rows",))
def residual_quantizer_forward(x, codebooks, block_rows=1024):
    """JAX/Pallas port of ResidualQuantizer.forward (eval mode).

    x         : (B, L, D) float32
    codebooks : tuple of (D, K_i) float32
    returns   : x_hat (B, L, D), indices (B, L, n) int32, inner_loss scalar
    """
    x = jnp.asarray(x, jnp.float32)
    B, L, D = x.shape
    n_q = len(codebooks)
    M = B * L

    # Only the codebook-size dim is padded (lane-dense argmin / matmuls);
    # padded codes get a huge ||c||^2 so they can never win the argmin.
    Kmax = max(int(cb.shape[1]) for cb in codebooks)
    Kp = _round_up(max(Kmax, 128), 128)

    # Row tiling: multiple of 8 sublanes; at least 2 tiles when there is
    # enough work so both v7x TensorCores get a share of the parallel axis.
    block_rows = _round_up(max(int(block_rows), 8), 8)
    if M >= 16:
        tm_cap = _round_up(pl.cdiv(M, 2), 8)
    else:
        tm_cap = _round_up(M, 8)
    TM = max(8, min(block_rows, tm_cap))
    num_tiles = pl.cdiv(M, TM)            # last tile may be ragged

    x2d = x.reshape(M, D)                 # no padded copy of x

    # Stack + pad codebooks along K only; precompute 0.5*||c||^2.
    cb_stack = jnp.zeros((n_q, D, Kp), jnp.float32)
    c2h_stack = jnp.full((n_q, 1, Kp), 1e30, jnp.float32)
    for i, cb in enumerate(codebooks):
        cb = jnp.asarray(cb, jnp.float32)
        Ki = cb.shape[1]
        cb_stack = cb_stack.at[i, :, :Ki].set(cb)
        c2h_stack = c2h_stack.at[i, 0, :Ki].set(0.5 * jnp.sum(cb * cb, axis=0))

    kernel = _make_rvq_kernel(n_q, TM, Kp)

    out_shape = (
        jax.ShapeDtypeStruct((M, D), jnp.float32),     # x_hat
        jax.ShapeDtypeStruct((M, n_q), jnp.int32),     # indices
        jax.ShapeDtypeStruct((M, 1), jnp.float32),     # per-row sq-err sums
    )
    xhat2d, idx2d, err_rows = pl.pallas_call(
        kernel,
        grid=(num_tiles,),
        in_specs=[
            pl.BlockSpec((TM, D), lambda i: (i, 0)),           # row tile
            pl.BlockSpec((n_q, D, Kp), lambda i: (0, 0, 0)),   # resident
            pl.BlockSpec((n_q, 1, Kp), lambda i: (0, 0, 0)),   # resident
        ],
        out_specs=(
            pl.BlockSpec((TM, D), lambda i: (i, 0)),
            pl.BlockSpec((TM, n_q), lambda i: (i, 0)),
            pl.BlockSpec((TM, 1), lambda i: (i, 0)),
        ),
        out_shape=out_shape,
        compiler_params=pltpu.CompilerParams(
            dimension_semantics=("parallel",),
            vmem_limit_bytes=32 * 1024 * 1024),
    )(x2d, cb_stack, c2h_stack)

    x_hat = xhat2d.reshape(B, L, D)
    indices = idx2d.reshape(B, L, n_q)
    inner_loss = jnp.sum(err_rows) / jnp.float32(M * D)
    return x_hat, indices, inner_loss


def _reference_forward(x, codebooks):
    """Pure-JAX reference matching the PyTorch module (eval mode)."""
    B, L, D = x.shape
    r = x.reshape(B * L, D)
    x_hat = jnp.zeros_like(r)
    loss = jnp.float32(0.0)
    idxs = []
    for cb in codebooks:
        dist = (jnp.sum(r * r, -1, keepdims=True)
                - 2.0 * r @ cb
                + jnp.sum(cb * cb, 0, keepdims=True))
        idx = jnp.argmin(dist, axis=-1)
        xq = cb.T[idx]
        loss = loss + jnp.mean((xq - r) ** 2)
        x_hat = x_hat + xq
        r = r - xq
        idxs.append(idx.reshape(B, L).astype(jnp.int32))
    return x_hat.reshape(B, L, D), jnp.stack(idxs, -1), loss


if __name__ == "__main__":
    # Module config (small, consistent with ResidualQuantizer.__init__).
    num_quantizers = 3
    dim = 32
    codebook_size = 64
    scale_factor = 4.0
    scale_factors = [1.0 / scale_factor ** i for i in range(num_quantizers)]

    key = jax.random.PRNGKey(0)
    kx, *kcb = jax.random.split(key, 1 + num_quantizers)

    # Input: (B, L, D) — batch=2, seq=8, hidden=32.
    B, L = 2, 8
    x = jax.random.normal(kx, (B, L, dim), dtype=jnp.float32)

    # Deterministic codebook init: randn(dim, codebook_size) * init_scale.
    codebooks = tuple(
        jax.random.normal(k, (dim, codebook_size), dtype=jnp.float32) * s
        for k, s in zip(kcb, scale_factors)
    )

    x_hat, indices, inner_loss = residual_quantizer_forward(x, codebooks)
    jax.block_until_ready((x_hat, indices, inner_loss))

    # Verify against pure-JAX reference.
    x_hat_r, indices_r, loss_r = _reference_forward(x, codebooks)
    np.testing.assert_array_equal(np.asarray(indices), np.asarray(indices_r))
    np.testing.assert_allclose(np.asarray(x_hat), np.asarray(x_hat_r),
                               rtol=1e-4, atol=1e-4)
    np.testing.assert_allclose(float(inner_loss), float(loss_r),
                               rtol=1e-4, atol=1e-5)

    assert x_hat.shape == (B, L, dim)
    assert indices.shape == (B, L, num_quantizers)
    assert indices.dtype == jnp.int32
    print("KERNEL_OK")
</pallas_src>

<mosaic_0001>
module attributes {stable_mosaic.version = 11 : i64} {
  func.func @kernel(%arg0: i32, %arg1: memref<8x32xf32, #tpu.memory_space<vmem>>, %arg2: memref<3x32x128xf32, #tpu.memory_space<vmem>>, %arg3: memref<3x1x128xf32, #tpu.memory_space<vmem>>, %arg4: memref<8x32xf32, #tpu.memory_space<vmem>>, %arg5: memref<8x3xi32, #tpu.memory_space<vmem>>, %arg6: memref<8x1xf32, #tpu.memory_space<vmem>>) attributes {dimension_semantics = [#tpu.dimension_semantics<parallel>], iteration_bounds = array<i64: 2>, scalar_prefetch = 0 : i64, scratch_operands = 0 : i64, tpu.core_type = #tpu.core_type<tc>, window_params = [{transform_indices = @transform_0, window_bounds = array<i64: 8, 32>}, {pipeline_mode = #tpu.pipeline_mode<synchronous>, transform_indices = @transform_1, window_bounds = array<i64: 3, 32, 128>}, {pipeline_mode = #tpu.pipeline_mode<synchronous>, transform_indices = @transform_2, window_bounds = array<i64: 3, 1, 128>}, {transform_indices = @transform_3, window_bounds = array<i64: 8, 32>}, {transform_indices = @transform_4, window_bounds = array<i64: 8, 3>}, {transform_indices = @transform_5, window_bounds = array<i64: 8, 1>}]} {
    %c0 = arith.constant 0 : index
    %c0_0 = arith.constant 0 : index
    %0 = vector.load %arg1[%c0, %c0_0] : memref<8x32xf32, #tpu.memory_space<vmem>>, vector<8x32xf32>
    %cst = arith.constant 0.000000e+00 : f32
    %1 = vector.broadcast %cst : f32 to vector<8x1xf32>
    %c0_1 = arith.constant 0 : index
    %c0_2 = arith.constant 0 : index
    %c0_3 = arith.constant 0 : index
    %2 = vector.load %arg2[%c0_1, %c0_2, %c0_3] : memref<3x32x128xf32, #tpu.memory_space<vmem>>, vector<1x32x128xf32>
    %3 = vector.shape_cast %2 : vector<1x32x128xf32> to vector<32x128xf32>
    %c0_4 = arith.constant 0 : index
    %c0_5 = arith.constant 0 : index
    %c0_6 = arith.constant 0 : index
    %4 = vector.load %arg3[%c0_4, %c0_5, %c0_6] : memref<3x1x128xf32, #tpu.memory_space<vmem>>, vector<1x1x128xf32>
    %5 = vector.shape_cast %4 : vector<1x1x128xf32> to vector<1x128xf32>
    %cst_7 = arith.constant dense<0.000000e+00> : vector<8x128xf32>
    %6 = tpu.matmul %0, %3, %cst_7 {dimension_numbers = #tpu.dot_dimension_numbers<[1], [0], [0], [1], [0, 0, 1, 1], [], []>} : vector<8x32xf32>, vector<32x128xf32>, vector<8x128xf32> -> vector<8x128xf32>
    %7 = vector.broadcast %5 : vector<1x128xf32> to vector<8x128xf32>
    %8 = arith.subf %7, %6 : vector<8x128xf32>
    %9 = tpu.iota {dimensions = array<i32: 1>} : vector<8x128xi32>
    %cst_8 = arith.constant dense<0x7F800000> : vector<8xf32>
    %10 = vector.multi_reduction <minimumf>, %8, %cst_8 [1] : vector<8x128xf32> to vector<8xf32>
    %11 = vector.shape_cast %10 : vector<8xf32> to vector<8x1xf32>
    %12 = vector.broadcast %11 : vector<8x1xf32> to vector<8x128xf32>
    %13 = arith.cmpf oeq, %8, %12 : vector<8x128xf32>
    %c128_i32 = arith.constant 128 : i32
    %14 = vector.broadcast %c128_i32 : i32 to vector<8x128xi32>
    %15 = arith.select %13, %9, %14 : vector<8x128xi1>, vector<8x128xi32>
    %cst_9 = arith.constant dense<2147483647> : vector<8xi32>
    %16 = vector.multi_reduction <minsi>, %15, %cst_9 [1] : vector<8x128xi32> to vector<8xi32>
    %17 = vector.shape_cast %16 : vector<8xi32> to vector<8x1xi32>
    %18 = vector.broadcast %17 : vector<8x1xi32> to vector<8x128xi32>
    %19 = arith.cmpi eq, %9, %18 : vector<8x128xi32>
    %20 = arith.extui %19 : vector<8x128xi1> to vector<8x128xi32>
    %21 = arith.sitofp %20 : vector<8x128xi32> to vector<8x128xf32>
    %cst_10 = arith.constant dense<0.000000e+00> : vector<8x32xf32>
    %22 = tpu.matmul %21, %3, %cst_10 {dimension_numbers = #tpu.dot_dimension_numbers<[1], [1], [0], [0], [0, 0, 1, 0], [], []>} : vector<8x128xf32>, vector<32x128xf32>, vector<8x32xf32> -> vector<8x32xf32>
    %23 = arith.subf %0, %22 : vector<8x32xf32>
    %24 = arith.mulf %23, %23 : vector<8x32xf32>
    %cst_11 = arith.constant dense<0.000000e+00> : vector<8xf32>
    %25 = vector.multi_reduction <add>, %24, %cst_11 [1] : vector<8x32xf32> to vector<8xf32>
    %26 = vector.shape_cast %25 : vector<8xf32> to vector<8x1xf32>
    %27 = arith.addf %1, %26 : vector<8x1xf32>
    %c0_12 = arith.constant 0 : index
    %c0_13 = arith.constant 0 : index
    %28 = vector.load %arg5[%c0_12, %c0_13] : memref<8x3xi32, #tpu.memory_space<vmem>>, vector<8x1xi32>
    tpu.vector_store %arg5[%c0_12, %c0_13], %17 {strides = array<i32>} : memref<8x3xi32, #tpu.memory_space<vmem>>, vector<8x1xi32>,
    %c1 = arith.constant 1 : index
    %c0_14 = arith.constant 0 : index
    %c0_15 = arith.constant 0 : index
    %29 = vector.load %arg2[%c1, %c0_14, %c0_15] : memref<3x32x128xf32, #tpu.memory_space<vmem>>, vector<1x32x128xf32>
    %30 = vector.shape_cast %29 : vector<1x32x128xf32> to vector<32x128xf32>
    %c1_16 = arith.constant 1 : index
    %c0_17 = arith.constant 0 : index
    %c0_18 = arith.constant 0 : index
    %31 = vector.load %arg3[%c1_16, %c0_17, %c0_18] : memref<3x1x128xf32, #tpu.memory_space<vmem>>, vector<1x1x128xf32>
    %32 = vector.shape_cast %31 : vector<1x1x128xf32> to vector<1x128xf32>
    %cst_19 = arith.constant dense<0.000000e+00> : vector<8x128xf32>
    %33 = tpu.matmul %23, %30, %cst_19 {dimension_numbers = #tpu.dot_dimension_numbers<[1], [0], [0], [1], [0, 0, 1, 1], [], []>} : vector<8x32xf32>, vector<32x128xf32>, vector<8x128xf32> -> vector<8x128xf32>
    %34 = vector.broadcast %32 : vector<1x128xf32> to vector<8x128xf32>
    %35 = arith.subf %34, %33 : vector<8x128xf32>
    %36 = tpu.iota {dimensions = array<i32: 1>} : vector<8x128xi32>
    %cst_20 = arith.constant dense<0x7F800000> : vector<8xf32>
    %37 = vector.multi_reduction <minimumf>, %35, %cst_20 [1] : vector<8x128xf32> to vector<8xf32>
    %38 = vector.shape_cast %37 : vector<8xf32> to vector<8x1xf32>
    %39 = vector.broadcast %38 : vector<8x1xf32> to vector<8x128xf32>
    %40 = arith.cmpf oeq, %35, %39 : vector<8x128xf32>
    %c128_i32_21 = arith.constant 128 : i32
    %41 = vector.broadcast %c128_i32_21 : i32 to vector<8x128xi32>
    %42 = arith.select %40, %36, %41 : vector<8x128xi1>, vector<8x128xi32>
    %cst_22 = arith.constant dense<2147483647> : vector<8xi32>
    %43 = vector.multi_reduction <minsi>, %42, %cst_22 [1] : vector<8x128xi32> to vector<8xi32>
    %44 = vector.shape_cast %43 : vector<8xi32> to vector<8x1xi32>
    %45 = vector.broadcast %44 : vector<8x1xi32> to vector<8x128xi32>
    %46 = arith.cmpi eq, %36, %45 : vector<8x128xi32>
    %47 = arith.extui %46 : vector<8x128xi1> to vector<8x128xi32>
    %48 = arith.sitofp %47 : vector<8x128xi32> to vector<8x128xf32>
    %cst_23 = arith.constant dense<0.000000e+00> : vector<8x32xf32>
    %49 = tpu.matmul %48, %30, %cst_23 {dimension_numbers = #tpu.dot_dimension_numbers<[1], [1], [0], [0], [0, 0, 1, 0], [], []>} : vector<8x128xf32>, vector<32x128xf32>, vector<8x32xf32> -> vector<8x32xf32>
    %50 = arith.subf %23, %49 : vector<8x32xf32>
    %51 = arith.mulf %50, %50 : vector<8x32xf32>
    %cst_24 = arith.constant dense<0.000000e+00> : vector<8xf32>
    %52 = vector.multi_reduction <add>, %51, %cst_24 [1] : vector<8x32xf32> to vector<8xf32>
    %53 = vector.shape_cast %52 : vector<8xf32> to vector<8x1xf32>
    %54 = arith.addf %27, %53 : vector<8x1xf32>
    %c0_25 = arith.constant 0 : index
    %c1_26 = arith.constant 1 : index
    %55 = vector.load %arg5[%c0_25, %c1_26] : memref<8x3xi32, #tpu.memory_space<vmem>>, vector<8x1xi32>
    tpu.vector_store %arg5[%c0_25, %c1_26], %44 {strides = array<i32>} : memref<8x3xi32, #tpu.memory_space<vmem>>, vector<8x1xi32>,
    %c2 = arith.constant 2 : index
    %c0_27 = arith.constant 0 : index
    %c0_28 = arith.constant 0 : index
    %56 = vector.load %arg2[%c2, %c0_27, %c0_28] : memref<3x32x128xf32, #tpu.memory_space<vmem>>, vector<1x32x128xf32>
    %57 = vector.shape_cast %56 : vector<1x32x128xf32> to vector<32x128xf32>
    %c2_29 = arith.constant 2 : index
    %c0_30 = arith.constant 0 : index
    %c0_31 = arith.constant 0 : index
    %58 = vector.load %arg3[%c2_29, %c0_30, %c0_31] : memref<3x1x128xf32, #tpu.memory_space<vmem>>, vector<1x1x128xf32>
    %59 = vector.shape_cast %58 : vector<1x1x128xf32> to vector<1x128xf32>
    %cst_32 = arith.constant dense<0.000000e+00> : vector<8x128xf32>
    %60 = tpu.matmul %50, %57, %cst_32 {dimension_numbers = #tpu.dot_dimension_numbers<[1], [0], [0], [1], [0, 0, 1, 1], [], []>} : vector<8x32xf32>, vector<32x128xf32>, vector<8x128xf32> -> vector<8x128xf32>
    %61 = vector.broadcast %59 : vector<1x128xf32> to vector<8x128xf32>
    %62 = arith.subf %61, %60 : vector<8x128xf32>
    %63 = tpu.iota {dimensions = array<i32: 1>} : vector<8x128xi32>
    %cst_33 = arith.constant dense<0x7F800000> : vector<8xf32>
    %64 = vector.multi_reduction <minimumf>, %62, %cst_33 [1] : vector<8x128xf32> to vector<8xf32>
    %65 = vector.shape_cast %64 : vector<8xf32> to vector<8x1xf32>
    %66 = vector.broadcast %65 : vector<8x1xf32> to vector<8x128xf32>
    %67 = arith.cmpf oeq, %62, %66 : vector<8x128xf32>
    %c128_i32_34 = arith.constant 128 : i32
    %68 = vector.broadcast %c128_i32_34 : i32 to vector<8x128xi32>
    %69 = arith.select %67, %63, %68 : vector<8x128xi1>, vector<8x128xi32>
    %cst_35 = arith.constant dense<2147483647> : vector<8xi32>
    %70 = vector.multi_reduction <minsi>, %69, %cst_35 [1] : vector<8x128xi32> to vector<8xi32>
    %71 = vector.shape_cast %70 : vector<8xi32> to vector<8x1xi32>
    %72 = vector.broadcast %71 : vector<8x1xi32> to vector<8x128xi32>
    %73 = arith.cmpi eq, %63, %72 : vector<8x128xi32>
    %74 = arith.extui %73 : vector<8x128xi1> to vector<8x128xi32>
    %75 = arith.sitofp %74 : vector<8x128xi32> to vector<8x128xf32>
    %cst_36 = arith.constant dense<0.000000e+00> : vector<8x32xf32>
    %76 = tpu.matmul %75, %57, %cst_36 {dimension_numbers = #tpu.dot_dimension_numbers<[1], [1], [0], [0], [0, 0, 1, 0], [], []>} : vector<8x128xf32>, vector<32x128xf32>, vector<8x32xf32> -> vector<8x32xf32>
    %77 = arith.subf %50, %76 : vector<8x32xf32>
    %78 = arith.mulf %77, %77 : vector<8x32xf32>
    %cst_37 = arith.constant dense<0.000000e+00> : vector<8xf32>
    %79 = vector.multi_reduction <add>, %78, %cst_37 [1] : vector<8x32xf32> to vector<8xf32>
    %80 = vector.shape_cast %79 : vector<8xf32> to vector<8x1xf32>
    %81 = arith.addf %54, %80 : vector<8x1xf32>
    %c0_38 = arith.constant 0 : index
    %c2_39 = arith.constant 2 : index
    %82 = vector.load %arg5[%c0_38, %c2_39] : memref<8x3xi32, #tpu.memory_space<vmem>>, vector<8x1xi32>
    tpu.vector_store %arg5[%c0_38, %c2_39], %71 {strides = array<i32>} : memref<8x3xi32, #tpu.memory_space<vmem>>, vector<8x1xi32>,
    %c0_40 = arith.constant 0 : index
    %c0_41 = arith.constant 0 : index
    %83 = vector.load %arg1[%c0_40, %c0_41] : memref<8x32xf32, #tpu.memory_space<vmem>>, vector<8x32xf32>
    %84 = arith.subf %83, %77 : vector<8x32xf32>
    %c0_42 = arith.constant 0 : index
    %c0_43 = arith.constant 0 : index
    %85 = vector.load %arg4[%c0_42, %c0_43] : memref<8x32xf32, #tpu.memory_space<vmem>>, vector<8x32xf32>
    tpu.vector_store %arg4[%c0_42, %c0_43], %84 {strides = array<i32>} : memref<8x32xf32, #tpu.memory_space<vmem>>, vector<8x32xf32>,
    %c0_44 = arith.constant 0 : index
    %c0_45 = arith.constant 0 : index
    %86 = vector.load %arg6[%c0_44, %c0_45] : memref<8x1xf32, #tpu.memory_space<vmem>>, vector<8x1xf32>
    tpu.vector_store %arg6[%c0_44, %c0_45], %81 {strides = array<i32>} : memref<8x1xf32, #tpu.memory_space<vmem>>, vector<8x1xf32>,
    return
  }
  func.func @transform_0(%arg0: i32) -> (i32, i32) {
    %c0_i32 = arith.constant 0 : i32
    %c0_i32_0 = arith.constant 0 : i32
    return %arg0, %c0_i32 : i32, i32
  }
  func.func @transform_1(%arg0: i32) -> (i32, i32, i32) {
    %c0_i32 = arith.constant 0 : i32
    %c0_i32_0 = arith.constant 0 : i32
    %c0_i32_1 = arith.constant 0 : i32
    %c0_i32_2 = arith.constant 0 : i32
    return %c0_i32, %c0_i32_0, %c0_i32_1 : i32, i32, i32
  }
  func.func @transform_2(%arg0: i32) -> (i32, i32, i32) {
    %c0_i32 = arith.constant 0 : i32
    %c0_i32_0 = arith.constant 0 : i32
    %c0_i32_1 = arith.constant 0 : i32
    %c0_i32_2 = arith.constant 0 : i32
    return %c0_i32, %c0_i32_0, %c0_i32_1 : i32, i32, i32
  }
  func.func @transform_3(%arg0: i32) -> (i32, i32) {
    %c0_i32 = arith.constant 0 : i32
    %c0_i32_0 = arith.constant 0 : i32
    return %arg0, %c0_i32 : i32, i32
  }
  func.func @transform_4(%arg0: i32) -> (i32, i32) {
    %c0_i32 = arith.constant 0 : i32
    %c0_i32_0 = arith.constant 0 : i32
    return %arg0, %c0_i32 : i32, i32
  }
  func.func @transform_5(%arg0: i32) -> (i32, i32) {
    %c0_i32 = arith.constant 0 : i32
    %c0_i32_0 = arith.constant 0 : i32
    return %arg0, %c0_i32 : i32, i32
  }
}

</mosaic_0001>

<llo_original>
// kernel: residual_quantizer_forward.1
$region0: #{residual_quantizer_forward.1}
  #allocation0 [shape = 'u32[]', space=smem, size = 0x4, offset = 0x4, fixed_abs, tag = 'smem constant byte address 0x4 - core index']
  #allocation1 [shape = 'u32[144,128]{1,0:T(1,128)}', space=vmem, size = 0x12000, scoped, tag = 'internal scratch']
  %s0 = inlined_call_operand.vmem [shape: f32[16,32], index: 0, kind: input, shape index: {}]
  %s1 = inlined_call_operand.vmem [shape: f32[3,32,128], index: 1, kind: input, shape index: {}]
  %s2 = inlined_call_operand.vmem [shape: f32[3,1,128], index: 2, kind: input, shape index: {}]
  %s3 = inlined_call_operand.hbm [shape: f32[16,32], index: 3, kind: output, shape index: {0}]
  %s4 = inlined_call_operand.vmem [shape: s32[16,3], index: 4, kind: output, shape index: {1}]
  %s5 = inlined_call_operand.vmem [shape: f32[16,1], index: 5, kind: output, shape index: {2}]
  %6 = xla_tuple %s3, %s4, %s5
  %s7 = sld [smem:[#allocation0]]
  $region61: #{residual_quantizer_forward.1} parent=0
    _
  %s9 = ssub.s32 1, %s7
  %s10 = scalar_select 0, %s9, %s7
  $region1: #{residual_quantizer_forward.1} parent=0
    #allocation2 [shape = 'u8[8192]{0}', space=vmem, size = 0x2000, scoped, tag = 'output window, operand 0']
    #allocation3 [shape = 's32[2]{0}', space=sflag, size = 0x8, scoped, tag = 'scoped memory for residual_quantizer_forward.1']
    %11 = vsyncpa [#allocation3], 0
    %s12 = scalar_lea.sflag [#allocation3], 1
    %13 = vsyncpa %s12, 0
    loop: start=0, step=1, limit=4
    $region2: #{residual_quantizer_forward.1} parent=1 // loop_pre_header
      _
    $region3: #{residual_quantizer_forward.1} parent=1 // loop_header
      %s15 = sphi 0, %s19
      %p16 = scmp.ge.s32.totalorder %s15, 4
      %s25 = sphi 0, %s27
      %s28 = sphi 0, %s25
      %s29 = sphi 0, %s28
      %s45 = sphi 0, %s29
      %s49 = sphi 0, %s49
      %s51 = sphi 0, %s49
      %s52 = sphi 0, %s51
      %s66 = sphi 0, %s52
      %s70 = sphi 0, %s70
      %s72 = sphi 0, %s70
      %s73 = sphi 0, %s72
      %s87 = sphi 0, %s73
      %s93 = sphi 0, %s95
      %s96 = sphi 0, %s93
      %s97 = sphi 0, %s96
      %s113 = sphi 0, %s97
      %s119 = sphi 0, %s121
      %s122 = sphi 0, %s119
      %s123 = sphi 0, %s122
      %s139 = sphi 0, %s123
      %s145 = sphi 0, %s147
      %s148 = sphi 0, %s145
      %s149 = sphi 0, %s148
      %s165 = sphi 0, %s149
    $region4: #{residual_quantizer_forward.1} parent=1 // loop_header_branch
      %18 = sbr.rel (%p16) target = $region8
    $region5: #{residual_quantizer_forward.1} parent=1 // loop_body
      %s20 = ssub.s32 %s15, 1
      %s21 = ssub.s32 %s15, 2
      %s22 = sadd.s32 %s15, 1
      %s23 = ssub.s32 %s15, %s22
      %p24 = scmp.eq.s32.totalorder %s23, 0
      %s26 = sadd.s32 %s25, 1
      %s27 = scalar_select %p24, %s25, %s26
      %p30 = pneg %p24
      %p31 = scmp.eq.s32.totalorder %s15, 1
      %p32 = por %p30, %p31
      %p33 = scmp.ne.s32.totalorder %s25, %s28
      %p34 = scmp.eq.s32.totalorder %s15, 0
      %p35 = por %p33, %p34
      %p36 = scmp.ne.s32.totalorder %s25, %s28
      %p37 = scmp.eq.s32.totalorder %s20, 1
      %p38 = por %p36, %p37
      %p39 = scmp.ne.s32.totalorder %s28, %s29
      %p40 = scmp.eq.s32.totalorder %s20, 0
      %p41 = por %p39, %p40
      %p42 = scmp.ne.s32.totalorder %s28, %s29
      %p43 = scmp.eq.s32.totalorder %s21, 1
      %p44 = por %p42, %p43
      %p46 = scmp.ne.s32.totalorder %s29, %s45
      %p47 = scmp.eq.s32.totalorder %s21, 0
      %p48 = por %p46, %p47
      %s50 = sadd.s32 %s49, 1
      %p53 = scmp.eq.s32.totalorder %s15, 1
      %p54 = scmp.ne.s32.totalorder %s49, %s51
      %p55 = scmp.eq.s32.totalorder %s15, 0
      %p56 = por %p54, %p55
      %p57 = scmp.ne.s32.totalorder %s49, %s51
      %p58 = scmp.eq.s32.totalorder %s20, 1
      %p59 = por %p57, %p58
      %p60 = scmp.ne.s32.totalorder %s51, %s52
      %p61 = scmp.eq.s32.totalorder %s20, 0
      %p62 = por %p60, %p61
      %p63 = scmp.ne.s32.totalorder %s51, %s52
      %p64 = scmp.eq.s32.totalorder %s21, 1
      %p65 = por %p63, %p64
      %p67 = scmp.ne.s32.totalorder %s52, %s66
      %p68 = scmp.eq.s32.totalorder %s21, 0
      %p69 = por %p67, %p68
      %s71 = sadd.s32 %s70, 1
      %p74 = scmp.eq.s32.totalorder %s15, 1
      %p75 = scmp.ne.s32.totalorder %s70, %s72
      %p76 = scmp.eq.s32.totalorder %s15, 0
      %p77 = por %p75, %p76
      %p78 = scmp.ne.s32.totalorder %s70, %s72
      %p79 = scmp.eq.s32.totalorder %s20, 1
      %p80 = por %p78, %p79
      %p81 = scmp.ne.s32.totalorder %s72, %s73
      %p82 = scmp.eq.s32.totalorder %s20, 0
      %p83 = por %p81, %p82
      %p84 = scmp.ne.s32.totalorder %s72, %s73
      %p85 = scmp.eq.s32.totalorder %s21, 1
      %p86 = por %p84, %p85
      %p88 = scmp.ne.s32.totalorder %s73, %s87
      %p89 = scmp.eq.s32.totalorder %s21, 0
      %p90 = por %p88, %p89
      %s91 = ssub.s32 %s15, %s22
      %p92 = scmp.eq.s32.totalorder %s91, 0
      %s94 = sadd.s32 %s93, 1
      %s95 = scalar_select %p92, %s93, %s94
      %p98 = pneg %p92
      %p99 = scmp.eq.s32.totalorder %s15, 1
      %p100 = por %p98, %p99
      %p101 = scmp.ne.s32.totalorder %s93, %s96
      %p102 = scmp.eq.s32.totalorder %s15, 0
      %p103 = por %p101, %p102
      %p104 = scmp.ne.s32.totalorder %s93, %s96
      %p105 = scmp.eq.s32.totalorder %s20, 1
      %p106 = por %p104, %p105
      %p107 = scmp.ne.s32.totalorder %s96, %s97
      %p108 = scmp.eq.s32.totalorder %s20, 0
      %p109 = por %p107, %p108
      %p110 = scmp.ne.s32.totalorder %s96, %s97
      %p111 = scmp.eq.s32.totalorder %s21, 1
      %p112 = por %p110, %p111
      %p114 = scmp.ne.s32.totalorder %s97, %s113
      %p115 = scmp.eq.s32.totalorder %s21, 0
      %p116 = por %p114, %p115
      %s117 = ssub.s32 %s15, %s22
      %p118 = scmp.eq.s32.totalorder %s117, 0
      %s120 = sadd.s32 %s119, 1
      %s121 = scalar_select %p118, %s119, %s120
      %p124 = pneg %p118
      %p125 = scmp.eq.s32.totalorder %s15, 1
      %p126 = por %p124, %p125
      %p127 = scmp.ne.s32.totalorder %s119, %s122
      %p128 = scmp.eq.s32.totalorder %s15, 0
      %p129 = por %p127, %p128
      %p130 = scmp.ne.s32.totalorder %s119, %s122
      %p131 = scmp.eq.s32.totalorder %s20, 1
      %p132 = por %p130, %p131
      %p133 = scmp.ne.s32.totalorder %s122, %s123
      %p134 = scmp.eq.s32.totalorder %s20, 0
      %p135 = por %p133, %p134
      %p136 = scmp.ne.s32.totalorder %s122, %s123
      %p137 = scmp.eq.s32.totalorder %s21, 1
      %p138 = por %p136, %p137
      %p140 = scmp.ne.s32.totalorder %s123, %s139
      %p141 = scmp.eq.s32.totalorder %s21, 0
      %p142 = por %p140, %p141
      %s143 = ssub.s32 %s15, %s22
      %p144 = scmp.eq.s32.totalorder %s143, 0
      %s146 = sadd.s32 %s145, 1
      %s147 = scalar_select %p144, %s145, %s146
      %p150 = pneg %p144
      %p151 = scmp.eq.s32.totalorder %s15, 1
      %p152 = por %p150, %p151
      %p153 = scmp.ne.s32.totalorder %s145, %s148
      %p154 = scmp.eq.s32.totalorder %s15, 0
      %p155 = por %p153, %p154
      %p156 = scmp.ne.s32.totalorder %s145, %s148
      %p157 = scmp.eq.s32.totalorder %s20, 1
      %p158 = por %p156, %p157
      %p159 = scmp.ne.s32.totalorder %s148, %s149
      %p160 = scmp.eq.s32.totalorder %s20, 0
      %p161 = por %p159, %p160
      %p162 = scmp.ne.s32.totalorder %s148, %s149
      %p163 = scmp.eq.s32.totalorder %s21, 1
      %p164 = por %p162, %p163
      %p166 = scmp.ne.s32.totalorder %s149, %s165
      %p167 = scmp.eq.s32.totalorder %s21, 0
      %p168 = por %p166, %p167
      %p169 = scmp.le.s32.totalorder 1, %s15
      %p170 = scmp.lt.s32.totalorder %s15, 3
      %p171 = pnand %p169, %p170
      %p172 = pneg %p171
      // Predicated region
      $region9: #{residual_quantizer_forward.1} parent=5 // pred_check
        _
      $region10: #{residual_quantizer_forward.1} parent=5 // pred_check_branch
        %174 = sbr.rel (%p171) target = $region12
      $region11: #{residual_quantizer_forward.1} parent=5 // pred_region
        %s175 = ssub.s32 %s15, 1
        // Predicated region
        $region13: #{residual_quantizer_forward.1} parent=11 // pred_check
          %p176 = pneg %p62
        $region14: #{residual_quantizer_forward.1} parent=11 // pred_check_branch
          %178 = sbr.rel (%p176) target = $region16
        $region15: #{residual_quantizer_forward.1} parent=11 // pred_region
          _
        $region16: #{residual_quantizer_forward.1} parent=11 // pred_fallthru
          _
        // Predicated region
        $region17: #{residual_quantizer_forward.1} parent=11 // pred_check
          %p179 = pneg %p83
        $region18: #{residual_quantizer_forward.1} parent=11 // pred_check_branch
          %181 = sbr.rel (%p179) target = $region20
        $region19: #{residual_quantizer_forward.1} parent=11 // pred_region
          _
        $region20: #{residual_quantizer_forward.1} parent=11 // pred_fallthru
          _
      $region12: #{residual_quantizer_forward.1} parent=5 // pred_fallthru
        _
      %p182 = scmp.lt.s32.totalorder %s15, 2
      // Predicated region
      $region21: #{residual_quantizer_forward.1} parent=5 // pred_check
        %p183 = pneg %p182
      $region22: #{residual_quantizer_forward.1} parent=5 // pred_check_branch
        %185 = sbr.rel (%p183) target = $region24
      $region23: #{residual_quantizer_forward.1} parent=5 // pred_region
        // Predicated region
        $region25: #{residual_quantizer_forward.1} parent=23 // pred_check
          %p186 = pneg %p35
        $region26: #{residual_quantizer_forward.1} parent=23 // pred_check_branch
          %188 = sbr.rel (%p186) target = $region28
        $region27: #{residual_quantizer_forward.1} parent=23 // pred_region
          %p189 = scmp.lt.s32.totalorder %s15, 1
          %s190 = scalar_select %p189, %s15, 1
          %s191 = smul.addr %s190, 8
          %s192 = scalar_lea.vmem %s0, %s191
        $region28: #{residual_quantizer_forward.1} parent=23 // pred_fallthru
          _
      $region24: #{residual_quantizer_forward.1} parent=5 // pred_fallthru
        _
      %p193 = scmp.le.s32.totalorder 1, %s15
      %p194 = scmp.lt.s32.totalorder %s15, 3
      %p195 = pnand %p193, %p194
      %p196 = pneg %p195
      // Predicated region
      $region29: #{residual_quantizer_forward.1} parent=5 // pred_check
        _
      $region30: #{residual_quantizer_forward.1} parent=5 // pred_check_branch
        %198 = sbr.rel (%p195) target = $region32
      $region31: #{residual_quantizer_forward.1} parent=5 // pred_region
        %s199 = ssub.s32 %s15, 1
        %p200 = scmp.lt.s32.totalorder %s20, 1
        %s201 = scalar_select %p200, %s20, 1
        %s202 = smul.addr %s201, 8
        %s203 = scalar_lea.vmem %s0, %s202
        %p204 = pneg %p41
        %p205 = pneg %p38
        %p206 = pneg %p62
        %p207 = pneg %p59
        %p208 = pneg %p83
        %p209 = pneg %p80
        %p210 = pneg %p109
        %p211 = pneg %p106
        %s212 = sand.u32 %s96, 1
        %s213 = scalar_lea.sflag [#allocation3], %s212
        %s214 = sand.u32 %s96, 1
        %s215 = smul.addr %s214, 8
        %s216 = scalar_lea.vmem [#allocation2], %s215
        %p217 = pneg %p135
        %p218 = pneg %p132
        %p219 = scmp.lt.s32.totalorder %s20, 1
        %s220 = scalar_select %p219, %s20, 1
        %s221 = smul.addr %s220, 8
        %s222 = scalar_lea.vmem %s4, %s221
        %p223 = pneg %p161
        %p224 = pneg %p158
        %p225 = scmp.lt.s32.totalorder %s20, 1
        %s226 = scalar_select %p225, %s20, 1
        %s227 = smul.addr %s226, 8
        %s228 = scalar_lea.vmem %s5, %s227
        %p229 = scmp.lt.s32.totalorder %s20, 1
        %s230 = scalar_select %p229, %s20, 1
        %s231 = smul.addr %s230, 8
        %s232 = scalar_lea.vmem %s0, %s231
        %p233 = scmp.lt.s32.totalorder %s20, 1
        %s234 = scalar_select %p233, %s20, 1
        %s235 = smul.addr %s234, 8
        %s236 = scalar_lea.vmem %s4, %s235
        %p237 = scmp.lt.s32.totalorder %s20, 1
        %s238 = scalar_select %p237, %s20, 1
        %s239 = smul.addr %s238, 8
        %s240 = scalar_lea.vmem %s5, %s239
        %v241 = vld [vmem:[%s232] sm:$0xff]
        %v242 = vld [vmem:[%s1] sm:$0xff]
        %v243 = vld [vmem:[%s1 + $0x8] sm:$0xff]
        %v244 = vld [vmem:[%s1 + $0x10] sm:$0xff]
        %v245 = vld [vmem:[%s1 + $0x18] sm:$0xff]
        %v246 = vld [vmem:[%s2] sm:$0x1]
        %vm247 = vcmask 261120
        %v249 = vsel %vm247, %v241, 0
        %251 = vmatprep.subr.mxu0 0.0
        %252 = vmatpush1.msra.mxu0 0.0
        %253 = vmatprep.subr.mxu0 0.0
        %254 = vmatpush1.msra.mxu0 0.0
        %255 = vmatprep.subr.mxu0 0.0
        %256 = vmatpush1.msra.mxu0 0.0
        %257 = vmatprep.subr.mxu0 0.0
        %258 = vmatpush1.msra.mxu0 0.0
        %259 = vmatprep.subr.mxu0 0.0
        %260 = vmatpush1.msra.mxu0 0.0
        %261 = vmatprep.subr.mxu0 0.0
        %262 = vmatpush1.msra.mxu0 0.0
        %263 = vmatprep.subr.mxu0 0.0
        %264 = vmatpush1.msra.mxu0 0.0
        %265 = vmatprep.subr.mxu0 0.0
        %266 = vmatpush1.msra.mxu0 0.0
        %267 = vmatprep.subr.mxu0 0.0
        %268 = vmatpush1.msra.mxu0 0.0
        %269 = vmatprep.subr.mxu0 0.0
        %270 = vmatpush1.msra.mxu0 0.0
        %271 = vmatprep.subr.mxu0 0.0
        %272 = vmatpush1.msra.mxu0 0.0
        %273 = vmatprep.subr.mxu0 0.0
        %274 = vmatpush1.msra.mxu0 0.0
        %275 = vmatprep.subr.mxu0 0.0
        %276 = vmatpush1.msra.mxu0 %v245
        %277 = vmatprep.subr.mxu0 0.0
        %278 = vmatpush1.msra.mxu0 %v244
        %279 = vmatprep.subr.mxu0 0.0
        %280 = vmatpush1.msra.mxu0 %v243
        %281 = vmatprep.subr.mxu0 0.0
        %282 = vmatpush1.msra.mxu0 %v242
        %283 = vmatprep.subr.mxu0 0.0
        %284 = vmatpush2.msra.mxu0 0.0
        %285 = vmatprep.subr.mxu0 0.0
        %286 = vmatpush2.msra.mxu0 0.0
        %287 = vmatprep.subr.mxu0 0.0
        %288 = vmatpush2.msra.mxu0 0.0
        %289 = vmatprep.subr.mxu0 0.0
        %290 = vmatpush2.msra.mxu0 0.0
        %291 = vmatprep.subr.mxu0 0.0
        %292 = vmatpush2.msra.mxu0 0.0
        %293 = vmatprep.subr.mxu0 0.0
        %294 = vmatpush2.msra.mxu0 0.0
        %295 = vmatprep.subr.mxu0 0.0
        %296 = vmatpush2.msra.mxu0 0.0
        %297 = vmatprep.subr.mxu0 0.0
        %298 = vmatpush2.msra.mxu0 0.0
        %299 = vmatprep.subr.mxu0 0.0
        %300 = vmatpush2.msra.mxu0 0.0
        %301 = vmatprep.subr.mxu0 0.0
        %302 = vmatpush2.msra.mxu0 0.0
        %303 = vmatprep.subr.mxu0 0.0
        %304 = vmatpush2.msra.mxu0 0.0
        %305 = vmatprep.subr.mxu0 0.0
        %306 = vmatpush2.msra.mxu0 0.0
        %307 = vmatprep.subr.mxu0 0.0
        %308 = vmatpush2.msra.mxu0 0.0
        %309 = vmatprep.subr.mxu0 0.0
        %310 = vmatpush2.msra.mxu0 0.0
        %311 = vmatprep.subr.mxu0 0.0
        %312 = vmatpush2.msra.mxu0 0.0
        %313 = vmatprep.subr.mxu0 0.0
        %314 = vmatpush2.msra.mxu0 0.0
        %315 = vmatprep.mubr.f32.mxu0 0.0
        %316 = vmatmul.mubr.f32.gmra.mxu0 %v249
        %v317 = vpop.f32.mrf.mxu0
        %v318 = vadd.f32 0.0, %v317
        %v319 = vpop.f32.mrf.mxu0
        %320 = vdwg.mxu0
        %v322 = vlaneseq
        %v323 = vshrl.u32 %v322, 7
        %v324 = vsub.s32 0, %v323
        %v325 = vrot.slane %v246, %v324
        %v327 = vsub.f32 %v325, %v318
        %v328 = vlaneseq
        %v329 = vand.u32 %v328, 127
        %330 = vmin.xlane.f32.xlu0 %v327
        %v331 = vpop.xlane.xlu0 %330
        %vm332 = vcmp.eq.f32.partialorder %v327, %v331
        %v333 = vsel %vm332, %v329, 128
        %v334 = vand.u32 %v333, 65535
        %v335 = vshra.s32 %v333, 16
        %v336 = vcvt.s32.f32 %v334
        %v337 = vcvt.s32.f32 %v335
        %338 = vmin.xlane.f32.xlu0 %v337
        %v339 = vpop.xlane.xlu0 %338
        %vm340 = vcmp.eq.f32.partialorder %v337, %v339
        %v341 = vsel %vm340, %v336, inf
        %342 = vmin.xlane.f32.xlu0 %v341
        %v343 = vpop.xlane.xlu0 %342
        %v344 = vcvt.f32.s32 %v343
        %v345 = vcvt.f32.s32 %v339
        %v346 = vshll.u32 %v345, 16
        %v347 = vadd.s32 %v346, %v344
        %vm348 = vcmp.eq.s32.totalorder %v329, %v347
        %v349 = vsel %vm348, 1, 0
        %v350 = vcvt.s32.f32 %v349
        %351 = vmatprep.subr.mxu0 0.0
        %352 = vmatpush1.xpose.msra.mxu0 0.0
        %353 = vmatprep.subr.mxu0 0.0
        %354 = vmatpush1.xpose.msra.mxu0 0.0
        %355 = vmatprep.subr.mxu0 0.0
        %356 = vmatpush1.xpose.msra.mxu0 0.0
        %357 = vmatprep.subr.mxu0 0.0
        %358 = vmatpush1.xpose.msra.mxu0 0.0
        %359 = vmatprep.subr.mxu0 0.0
        %360 = vmatpush1.xpose.msra.mxu0 0.0
        %361 = vmatprep.subr.mxu0 0.0
        %362 = vmatpush1.xpose.msra.mxu0 0.0
        %363 = vmatprep.subr.mxu0 0.0
        %364 = vmatpush1.xpose.msra.mxu0 0.0
        %365 = vmatprep.subr.mxu0 0.0
        %366 = vmatpush1.xpose.msra.mxu0 0.0
        %367 = vmatprep.subr.mxu0 0.0
        %368 = vmatpush1.xpose.msra.mxu0 0.0
        %369 = vmatprep.subr.mxu0 0.0
        %370 = vmatpush1.xpose.msra.mxu0 0.0
        %371 = vmatprep.subr.mxu0 0.0
        %372 = vmatpush1.xpose.msra.mxu0 0.0
        %373 = vmatprep.subr.mxu0 0.0
        %374 = vmatpush1.xpose.msra.mxu0 0.0
        %375 = vmatprep.subr.mxu0 0.0
        %376 = vmatpush1.xpose.msra.mxu0 %v245
        %377 = vmatprep.subr.mxu0 0.0
        %378 = vmatpush1.xpose.msra.mxu0 %v244
        %379 = vmatprep.subr.mxu0 0.0
        %380 = vmatpush1.xpose.msra.mxu0 %v243
        %381 = vmatprep.subr.mxu0 0.0
        %382 = vmatpush1.xpose.msra.mxu0 %v242
        %383 = vmatprep.subr.mxu0 0.0
        %384 = vmatpush2.xpose.msra.mxu0 0.0
        %385 = vmatprep.subr.mxu0 0.0
        %386 = vmatpush2.xpose.msra.mxu0 0.0
        %387 = vmatprep.subr.mxu0 0.0
        %388 = vmatpush2.xpose.msra.mxu0 0.0
        %389 = vmatprep.subr.mxu0 0.0
        %390 = vmatpush2.xpose.msra.mxu0 0.0
        %391 = vmatprep.subr.mxu0 0.0
        %392 = vmatpush2.xpose.msra.mxu0 0.0
        %393 = vmatprep.subr.mxu0 0.0
        %394 = vmatpush2.xpose.msra.mxu0 0.0
        %395 = vmatprep.subr.mxu0 0.0
        %396 = vmatpush2.xpose.msra.mxu0 0.0
        %397 = vmatprep.subr.mxu0 0.0
        %398 = vmatpush2.xpose.msra.mxu0 0.0
        %399 = vmatprep.subr.mxu0 0.0
        %400 = vmatpush2.xpose.msra.mxu0 0.0
        %401 = vmatprep.subr.mxu0 0.0
        %402 = vmatpush2.xpose.msra.mxu0 0.0
        %403 = vmatprep.subr.mxu0 0.0
        %404 = vmatpush2.xpose.msra.mxu0 0.0
        %405 = vmatprep.subr.mxu0 0.0
        %406 = vmatpush2.xpose.msra.mxu0 0.0
        %407 = vmatprep.subr.mxu0 0.0
        %408 = vmatpush2.xpose.msra.mxu0 0.0
        %409 = vmatprep.subr.mxu0 0.0
        %410 = vmatpush2.xpose.msra.mxu0 0.0
        %411 = vmatprep.subr.mxu0 0.0
        %412 = vmatpush2.xpose.msra.mxu0 0.0
        %413 = vmatprep.subr.mxu0 0.0
        %414 = vmatpush2.xpose.msra.mxu0 0.0
        %415 = vmatprep.mubr.f32.mxu0 0.0
        %416 = vmatmul.mubr.f32.gmra.mxu0 %v350
        %v417 = vpop.f32.mrf.mxu0
        %v418 = vadd.f32 0.0, %v417
        %v419 = vpop.f32.mrf.mxu0
        %420 = vdwg.mxu0
        %v421 = vsub.f32 %v241, %v418
        %v422 = vmul.f32 %v421, %v421
        %v423 = vsel %vm247, %v422, 0.0
        %424 = vadd.xlane.f32.xlu0 %v423
        %v425 = vpop.xlane.xlu0 %424
        %v426 = vadd.f32 %v425, 0.0
        %vm427 = vcmask 7168
        %428 = vst.msk [vmem:[%s236] sm:$0xff] %vm427, %v347
        %s429 = scalar_lea.vmem %s1, 32
        %v430 = vld [vmem:[%s429] sm:$0xff]
        %v431 = vld [vmem:[%s429 + $0x8] sm:$0xff]
        %v432 = vld [vmem:[%s429 + $0x10] sm:$0xff]
        %v433 = vld [vmem:[%s429 + $0x18] sm:$0xff]
        %s434 = scalar_lea.vmem %s2, 1
        %v435 = vld [vmem:[%s434] sm:$0x1]
        %v437 = vsel %vm247, %v421, 0
        %439 = vmatprep.subr.mxu0 0.0
        %440 = vmatpush1.msra.mxu0 0.0
        %441 = vmatprep.subr.mxu0 0.0
        %442 = vmatpush1.msra.mxu0 0.0
        %443 = vmatprep.subr.mxu0 0.0
        %444 = vmatpush1.msra.mxu0 0.0
        %445 = vmatprep.subr.mxu0 0.0
        %446 = vmatpush1.msra.mxu0 0.0
        %447 = vmatprep.subr.mxu0 0.0
        %448 = vmatpush1.msra.mxu0 0.0
        %449 = vmatprep.subr.mxu0 0.0
        %450 = vmatpush1.msra.mxu0 0.0
        %451 = vmatprep.subr.mxu0 0.0
        %452 = vmatpush1.msra.mxu0 0.0
        %453 = vmatprep.subr.mxu0 0.0
        %454 = vmatpush1.msra.mxu0 0.0
        %455 = vmatprep.subr.mxu0 0.0
        %456 = vmatpush1.msra.mxu0 0.0
        %457 = vmatprep.subr.mxu0 0.0
        %458 = vmatpush1.msra.mxu0 0.0
        %459 = vmatprep.subr.mxu0 0.0
        %460 = vmatpush1.msra.mxu0 0.0
        %461 = vmatprep.subr.mxu0 0.0
        %462 = vmatpush1.msra.mxu0 0.0
        %463 = vmatprep.subr.mxu0 0.0
        %464 = vmatpush1.msra.mxu0 %v433
        %465 = vmatprep.subr.mxu0 0.0
        %466 = vmatpush1.msra.mxu0 %v432
        %467 = vmatprep.subr.mxu0 0.0
        %468 = vmatpush1.msra.mxu0 %v431
        %469 = vmatprep.subr.mxu0 0.0
        %470 = vmatpush1.msra.mxu0 %v430
        %471 = vmatprep.subr.mxu0 0.0
        %472 = vmatpush2.msra.mxu0 0.0
        %473 = vmatprep.subr.mxu0 0.0
        %474 = vmatpush2.msra.mxu0 0.0
        %475 = vmatprep.subr.mxu0 0.0
        %476 = vmatpush2.msra.mxu0 0.0
        %477 = vmatprep.subr.mxu0 0.0
        %478 = vmatpush2.msra.mxu0 0.0
        %479 = vmatprep.subr.mxu0 0.0
        %480 = vmatpush2.msra.mxu0 0.0
        %481 = vmatprep.subr.mxu0 0.0
        %482 = vmatpush2.msra.mxu0 0.0
        %483 = vmatprep.subr.mxu0 0.0
        %484 = vmatpush2.msra.mxu0 0.0
        %485 = vmatprep.subr.mxu0 0.0
        %486 = vmatpush2.msra.mxu0 0.0
        %487 = vmatprep.subr.mxu0 0.0
        %488 = vmatpush2.msra.mxu0 0.0
        %489 = vmatprep.subr.mxu0 0.0
        %490 = vmatpush2.msra.mxu0 0.0
        %491 = vmatprep.subr.mxu0 0.0
        %492 = vmatpush2.msra.mxu0 0.0
        %493 = vmatprep.subr.mxu0 0.0
        %494 = vmatpush2.msra.mxu0 0.0
        %495 = vmatprep.subr.mxu0 0.0
        %496 = vmatpush2.msra.mxu0 0.0
        %497 = vmatprep.subr.mxu0 0.0
        %498 = vmatpush2.msra.mxu0 0.0
        %499 = vmatprep.subr.mxu0 0.0
        %500 = vmatpush2.msra.mxu0 0.0
        %501 = vmatprep.subr.mxu0 0.0
        %502 = vmatpush2.msra.mxu0 0.0
        %503 = vmatprep.mubr.f32.mxu0 0.0
        %504 = vmatmul.mubr.f32.gmra.mxu0 %v437
        %v505 = vpop.f32.mrf.mxu0
        %v506 = vadd.f32 0.0, %v505
        %v507 = vpop.f32.mrf.mxu0
        %508 = vdwg.mxu0
        %v510 = vlaneseq
        %v511 = vshrl.u32 %v510, 7
        %v512 = vsub.s32 0, %v511
        %v513 = vrot.slane %v435, %v512
        %v515 = vsub.f32 %v513, %v506
        %516 = vmin.xlane.f32.xlu0 %v515
        %v517 = vpop.xlane.xlu0 %516
        %vm518 = vcmp.eq.f32.partialorder %v515, %v517
        %v519 = vsel %vm518, %v329, 128
        %v520 = vand.u32 %v519, 65535
        %v521 = vshra.s32 %v519, 16
        %v522 = vcvt.s32.f32 %v520
        %v523 = vcvt.s32.f32 %v521
        %524 = vmin.xlane.f32.xlu0 %v523
        %v525 = vpop.xlane.xlu0 %524
        %vm526 = vcmp.eq.f32.partialorder %v523, %v525
        %v527 = vsel %vm526, %v522, inf
        %528 = vmin.xlane.f32.xlu0 %v527
        %v529 = vpop.xlane.xlu0 %528
        %v530 = vcvt.f32.s32 %v529
        %v531 = vcvt.f32.s32 %v525
        %v532 = vshll.u32 %v531, 16
        %v533 = vadd.s32 %v532, %v530
        %vm534 = vcmp.eq.s32.totalorder %v329, %v533
        %v535 = vsel %vm534, 1, 0
        %v536 = vcvt.s32.f32 %v535
        %537 = vmatprep.subr.mxu0 0.0
        %538 = vmatpush1.xpose.msra.mxu0 0.0
        %539 = vmatprep.subr.mxu0 0.0
        %540 = vmatpush1.xpose.msra.mxu0 0.0
        %541 = vmatprep.subr.mxu0 0.0
        %542 = vmatpush1.xpose.msra.mxu0 0.0
        %543 = vmatprep.subr.mxu0 0.0
        %544 = vmatpush1.xpose.msra.mxu0 0.0
        %545 = vmatprep.subr.mxu0 0.0
        %546 = vmatpush1.xpose.msra.mxu0 0.0
        %547 = vmatprep.subr.mxu0 0.0
        %548 = vmatpush1.xpose.msra.mxu0 0.0
        %549 = vmatprep.subr.mxu0 0.0
        %550 = vmatpush1.xpose.msra.mxu0 0.0
        %551 = vmatprep.subr.mxu0 0.0
        %552 = vmatpush1.xpose.msra.mxu0 0.0
        %553 = vmatprep.subr.mxu0 0.0
        %554 = vmatpush1.xpose.msra.mxu0 0.0
        %555 = vmatprep.subr.mxu0 0.0
        %556 = vmatpush1.xpose.msra.mxu0 0.0
        %557 = vmatprep.subr.mxu0 0.0
        %558 = vmatpush1.xpose.msra.mxu0 0.0
        %559 = vmatprep.subr.mxu0 0.0
        %560 = vmatpush1.xpose.msra.mxu0 0.0
        %561 = vmatprep.subr.mxu0 0.0
        %562 = vmatpush1.xpose.msra.mxu0 %v433
        %563 = vmatprep.subr.mxu0 0.0
        %564 = vmatpush1.xpose.msra.mxu0 %v432
        %565 = vmatprep.subr.mxu0 0.0
        %566 = vmatpush1.xpose.msra.mxu0 %v431
        %567 = vmatprep.subr.mxu0 0.0
        %568 = vmatpush1.xpose.msra.mxu0 %v430
        %569 = vmatprep.subr.mxu0 0.0
        %570 = vmatpush2.xpose.msra.mxu0 0.0
        %571 = vmatprep.subr.mxu0 0.0
        %572 = vmatpush2.xpose.msra.mxu0 0.0
        %573 = vmatprep.subr.mxu0 0.0
        %574 = vmatpush2.xpose.msra.mxu0 0.0
        %575 = vmatprep.subr.mxu0 0.0
        %576 = vmatpush2.xpose.msra.mxu0 0.0
        %577 = vmatprep.subr.mxu0 0.0
        %578 = vmatpush2.xpose.msra.mxu0 0.0
        %579 = vmatprep.subr.mxu0 0.0
        %580 = vmatpush2.xpose.msra.mxu0 0.0
        %581 = vmatprep.subr.mxu0 0.0
        %582 = vmatpush2.xpose.msra.mxu0 0.0
        %583 = vmatprep.subr.mxu0 0.0
        %584 = vmatpush2.xpose.msra.mxu0 0.0
        %585 = vmatprep.subr.mxu0 0.0
        %586 = vmatpush2.xpose.msra.mxu0 0.0
        %587 = vmatprep.subr.mxu0 0.0
        %588 = vmatpush2.xpose.msra.mxu0 0.0
        %589 = vmatprep.subr.mxu0 0.0
        %590 = vmatpush2.xpose.msra.mxu0 0.0
        %591 = vmatprep.subr.mxu0 0.0
        %592 = vmatpush2.xpose.msra.mxu0 0.0
        %593 = vmatprep.subr.mxu0 0.0
        %594 = vmatpush2.xpose.msra.mxu0 0.0
        %595 = vmatprep.subr.mxu0 0.0
        %596 = vmatpush2.xpose.msra.mxu0 0.0
        %597 = vmatprep.subr.mxu0 0.0
        %598 = vmatpush2.xpose.msra.mxu0 0.0
        %599 = vmatprep.subr.mxu0 0.0
        %600 = vmatpush2.xpose.msra.mxu0 0.0
        %601 = vmatprep.mubr.f32.mxu0 0.0
        %602 = vmatmul.mubr.f32.gmra.mxu0 %v536
        %v603 = vpop.f32.mrf.mxu0
        %v604 = vadd.f32 0.0, %v603
        %v605 = vpop.f32.mrf.mxu0
        %606 = vdwg.mxu0
        %v607 = vsub.f32 %v421, %v604
        %v608 = vmul.f32 %v607, %v607
        %v609 = vsel %vm247, %v608, 0.0
        %610 = vadd.xlane.f32.xlu0 %v609
        %v611 = vpop.xlane.xlu0 %610
        %v612 = vadd.f32 %v426, %v611
        %vm613 = vcmask 15368
        %614 = vst.msk [vmem:[%s236] sm:$0xff] %vm613, %v533
        %s615 = scalar_lea.vmem %s1, 64
        %v616 = vld [vmem:[%s615] sm:$0xff]
        %v617 = vld [vmem:[%s615 + $0x8] sm:$0xff]
        %v618 = vld [vmem:[%s615 + $0x10] sm:$0xff]
        %v619 = vld [vmem:[%s615 + $0x18] sm:$0xff]
        %s620 = scalar_lea.vmem %s2, 2
        %v621 = vld [vmem:[%s620] sm:$0x1]
        %v623 = vsel %vm247, %v607, 0
        %625 = vmatprep.subr.mxu0 0.0
        %626 = vmatpush1.msra.mxu0 0.0
        %627 = vmatprep.subr.mxu0 0.0
        %628 = vmatpush1.msra.mxu0 0.0
        %629 = vmatprep.subr.mxu0 0.0
        %630 = vmatpush1.msra.mxu0 0.0
        %631 = vmatprep.subr.mxu0 0.0
        %632 = vmatpush1.msra.mxu0 0.0
        %633 = vmatprep.subr.mxu0 0.0
        %634 = vmatpush1.msra.mxu0 0.0
        %635 = vmatprep.subr.mxu0 0.0
        %636 = vmatpush1.msra.mxu0 0.0
        %637 = vmatprep.subr.mxu0 0.0
        %638 = vmatpush1.msra.mxu0 0.0
        %639 = vmatprep.subr.mxu0 0.0
        %640 = vmatpush1.msra.mxu0 0.0
        %641 = vmatprep.subr.mxu0 0.0
        %642 = vmatpush1.msra.mxu0 0.0
        %643 = vmatprep.subr.mxu0 0.0
        %644 = vmatpush1.msra.mxu0 0.0
        %645 = vmatprep.subr.mxu0 0.0
        %646 = vmatpush1.msra.mxu0 0.0
        %647 = vmatprep.subr.mxu0 0.0
        %648 = vmatpush1.msra.mxu0 0.0
        %649 = vmatprep.subr.mxu0 0.0
        %650 = vmatpush1.msra.mxu0 %v619
        %651 = vmatprep.subr.mxu0 0.0
        %652 = vmatpush1.msra.mxu0 %v618
        %653 = vmatprep.subr.mxu0 0.0
        %654 = vmatpush1.msra.mxu0 %v617
        %655 = vmatprep.subr.mxu0 0.0
        %656 = vmatpush1.msra.mxu0 %v616
        %657 = vmatprep.subr.mxu0 0.0
        %658 = vmatpush2.msra.mxu0 0.0
        %659 = vmatprep.subr.mxu0 0.0
        %660 = vmatpush2.msra.mxu0 0.0
        %661 = vmatprep.subr.mxu0 0.0
        %662 = vmatpush2.msra.mxu0 0.0
        %663 = vmatprep.subr.mxu0 0.0
        %664 = vmatpush2.msra.mxu0 0.0
        %665 = vmatprep.subr.mxu0 0.0
        %666 = vmatpush2.msra.mxu0 0.0
        %667 = vmatprep.subr.mxu0 0.0
        %668 = vmatpush2.msra.mxu0 0.0
        %669 = vmatprep.subr.mxu0 0.0
        %670 = vmatpush2.msra.mxu0 0.0
        %671 = vmatprep.subr.mxu0 0.0
        %672 = vmatpush2.msra.mxu0 0.0
        %673 = vmatprep.subr.mxu0 0.0
        %674 = vmatpush2.msra.mxu0 0.0
        %675 = vmatprep.subr.mxu0 0.0
        %676 = vmatpush2.msra.mxu0 0.0
        %677 = vmatprep.subr.mxu0 0.0
        %678 = vmatpush2.msra.mxu0 0.0
        %679 = vmatprep.subr.mxu0 0.0
        %680 = vmatpush2.msra.mxu0 0.0
        %681 = vmatprep.subr.mxu0 0.0
        %682 = vmatpush2.msra.mxu0 0.0
        %683 = vmatprep.subr.mxu0 0.0
        %684 = vmatpush2.msra.mxu0 0.0
        %685 = vmatprep.subr.mxu0 0.0
        %686 = vmatpush2.msra.mxu0 0.0
        %687 = vmatprep.subr.mxu0 0.0
        %688 = vmatpush2.msra.mxu0 0.0
        %689 = vmatprep.mubr.f32.mxu0 0.0
        %690 = vmatmul.mubr.f32.gmra.mxu0 %v623
        %v691 = vpop.f32.mrf.mxu0
        %v692 = vadd.f32 0.0, %v691
        %v693 = vpop.f32.mrf.mxu0
        %694 = vdwg.mxu0
        %v696 = vlaneseq
        %v697 = vshrl.u32 %v696, 7
        %v698 = vsub.s32 0, %v697
        %v699 = vrot.slane %v621, %v698
        %v701 = vsub.f32 %v699, %v692
        %702 = vmin.xlane.f32.xlu0 %v701
        %v703 = vpop.xlane.xlu0 %702
        %vm704 = vcmp.eq.f32.partialorder %v701, %v703
        %v705 = vsel %vm704, %v329, 128
        %v706 = vand.u32 %v705, 65535
        %v707 = vshra.s32 %v705, 16
        %v708 = vcvt.s32.f32 %v706
        %v709 = vcvt.s32.f32 %v707
        %710 = vmin.xlane.f32.xlu0 %v709
        %v711 = vpop.xlane.xlu0 %710
        %vm712 = vcmp.eq.f32.partialorder %v709, %v711
        %v713 = vsel %vm712, %v708, inf
        %714 = vmin.xlane.f32.xlu0 %v713
        %v715 = vpop.xlane.xlu0 %714
        %v716 = vcvt.f32.s32 %v715
        %v717 = vcvt.f32.s32 %v711
        %v718 = vshll.u32 %v717, 16
        %v719 = vadd.s32 %v718, %v716
        %vm720 = vcmp.eq.s32.totalorder %v329, %v719
        %v721 = vsel %vm720, 1, 0
        %v722 = vcvt.s32.f32 %v721
        %723 = vmatprep.subr.mxu0 0.0
        %724 = vmatpush1.xpose.msra.mxu0 0.0
        %725 = vmatprep.subr.mxu0 0.0
        %726 = vmatpush1.xpose.msra.mxu0 0.0
        %727 = vmatprep.subr.mxu0 0.0
        %728 = vmatpush1.xpose.msra.mxu0 0.0
        %729 = vmatprep.subr.mxu0 0.0
        %730 = vmatpush1.xpose.msra.mxu0 0.0
        %731 = vmatprep.subr.mxu0 0.0
        %732 = vmatpush1.xpose.msra.mxu0 0.0
        %733 = vmatprep.subr.mxu0 0.0
        %734 = vmatpush1.xpose.msra.mxu0 0.0
        %735 = vmatprep.subr.mxu0 0.0
        %736 = vmatpush1.xpose.msra.mxu0 0.0
        %737 = vmatprep.subr.mxu0 0.0
        %738 = vmatpush1.xpose.msra.mxu0 0.0
        %739 = vmatprep.subr.mxu0 0.0
        %740 = vmatpush1.xpose.msra.mxu0 0.0
        %741 = vmatprep.subr.mxu0 0.0
        %742 = vmatpush1.xpose.msra.mxu0 0.0
        %743 = vmatprep.subr.mxu0 0.0
        %744 = vmatpush1.xpose.msra.mxu0 0.0
        %745 = vmatprep.subr.mxu0 0.0
        %746 = vmatpush1.xpose.msra.mxu0 0.0
        %747 = vmatprep.subr.mxu0 0.0
        %748 = vmatpush1.xpose.msra.mxu0 %v619
        %749 = vmatprep.subr.mxu0 0.0
        %750 = vmatpush1.xpose.msra.mxu0 %v618
        %751 = vmatprep.subr.mxu0 0.0
        %752 = vmatpush1.xpose.msra.mxu0 %v617
        %753 = vmatprep.subr.mxu0 0.0
        %754 = vmatpush1.xpose.msra.mxu0 %v616
        %755 = vmatprep.subr.mxu0 0.0
        %756 = vmatpush2.xpose.msra.mxu0 0.0
        %757 = vmatprep.subr.mxu0 0.0
        %758 = vmatpush2.xpose.msra.mxu0 0.0
        %759 = vmatprep.subr.mxu0 0.0
        %760 = vmatpush2.xpose.msra.mxu0 0.0
        %761 = vmatprep.subr.mxu0 0.0
        %762 = vmatpush2.xpose.msra.mxu0 0.0
        %763 = vmatprep.subr.mxu0 0.0
        %764 = vmatpush2.xpose.msra.mxu0 0.0
        %765 = vmatprep.subr.mxu0 0.0
        %766 = vmatpush2.xpose.msra.mxu0 0.0
        %767 = vmatprep.subr.mxu0 0.0
        %768 = vmatpush2.xpose.msra.mxu0 0.0
        %769 = vmatprep.subr.mxu0 0.0
        %770 = vmatpush2.xpose.msra.mxu0 0.0
        %771 = vmatprep.subr.mxu0 0.0
        %772 = vmatpush2.xpose.msra.mxu0 0.0
        %773 = vmatprep.subr.mxu0 0.0
        %774 = vmatpush2.xpose.msra.mxu0 0.0
        %775 = vmatprep.subr.mxu0 0.0
        %776 = vmatpush2.xpose.msra.mxu0 0.0
        %777 = vmatprep.subr.mxu0 0.0
        %778 = vmatpush2.xpose.msra.mxu0 0.0
        %779 = vmatprep.subr.mxu0 0.0
        %780 = vmatpush2.xpose.msra.mxu0 0.0
        %781 = vmatprep.subr.mxu0 0.0
        %782 = vmatpush2.xpose.msra.mxu0 0.0
        %783 = vmatprep.subr.mxu0 0.0
        %784 = vmatpush2.xpose.msra.mxu0 0.0
        %785 = vmatprep.subr.mxu0 0.0
        %786 = vmatpush2.xpose.msra.mxu0 0.0
        %787 = vmatprep.mubr.f32.mxu0 0.0
        %788 = vmatmul.mubr.f32.gmra.mxu0 %v722
        %v789 = vpop.f32.mrf.mxu0
        %v790 = vadd.f32 0.0, %v789
        %v791 = vpop.f32.mrf.mxu0
        %792 = vdwg.mxu0
        %v793 = vsub.f32 %v607, %v790
        %v794 = vmul.f32 %v793, %v793
        %v795 = vsel %vm247, %v794, 0.0
        %796 = vadd.xlane.f32.xlu0 %v795
        %v797 = vpop.xlane.xlu0 %796
        %v798 = vadd.f32 %v612, %v797
        %vm799 = vcmask 23568
        %800 = vst.msk [vmem:[%s236] sm:$0xff] %vm799, %v719
        %v801 = vld [vmem:[%s232] sm:$0xff]
        %v802 = vsub.f32 %v801, %v793
        %803 = vst.msk [vmem:[%s216] sm:$0xff] %vm247, %v802
        %804 = vst.msk [vmem:[%s240] sm:$0xff] %vm427, %v798
        %s805 = sand.u32 %s96, 1
        %s806 = scalar_lea.sflag [#allocation3], %s805
        %s807 = sand.u32 %s96, 1
        %s808 = smul.addr %s807, 8
        %s809 = scalar_lea.vmem [#allocation2], %s808
        %p810 = scmp.lt.s32.totalorder %s20, 1
        %s811 = scalar_select %p810, %s20, 1
        %s812 = smul.addr %s811, 8
        %s813 = scalar_lea.vmem %s4, %s812
        %p814 = scmp.lt.s32.totalorder %s20, 1
        %s815 = scalar_select %p814, %s20, 1
        %s816 = smul.addr %s815, 8
        %s817 = scalar_lea.vmem %s5, %s816
        // Predicated region
        $region33: #{residual_quantizer_forward.1} parent=31 // pred_check
          %p818 = pneg %p106
        $region34: #{residual_quantizer_forward.1} parent=31 // pred_check_branch
          %820 = sbr.rel (%p818) target = $region36
        $region35: #{residual_quantizer_forward.1} parent=31 // pred_region
          %s822 = ssub.s32 128, 128
          %823 = vsyncadd %s806, %s822
          %s824 = smul.addr %s20, 128
          %s825 = scalar_lea.hbm %s3, %s824
          %s827 = sshll.u32 %s809, 4
          %s828 = int_to_ptr.vmem [resolvable:$true] %s827
          %830 = dma.vmem_to_hbm [thread:$0]  %s828, 128, %s825, %s806
        $region36: #{residual_quantizer_forward.1} parent=31 // pred_fallthru
          _
        // Predicated region
        $region37: #{residual_quantizer_forward.1} parent=31 // pred_check
          %p831 = pneg %p132
        $region38: #{residual_quantizer_forward.1} parent=31 // pred_check_branch
          %833 = sbr.rel (%p831) target = $region40
        $region39: #{residual_quantizer_forward.1} parent=31 // pred_region
          _
        $region40: #{residual_quantizer_forward.1} parent=31 // pred_fallthru
          _
        // Predicated region
        $region41: #{residual_quantizer_forward.1} parent=31 // pred_check
          %p834 = pneg %p158
        $region42: #{residual_quantizer_forward.1} parent=31 // pred_check_branch
          %836 = sbr.rel (%p834) target = $region44
        $region43: #{residual_quantizer_forward.1} parent=31 // pred_region
          _
        $region44: #{residual_quantizer_forward.1} parent=31 // pred_fallthru
          _
      $region32: #{residual_quantizer_forward.1} parent=5 // pred_fallthru
        _
      %p837 = scmp.le.s32.totalorder 2, %s15
      // Predicated region
      $region45: #{residual_quantizer_forward.1} parent=5 // pred_check
        %p838 = pneg %p837
      $region46: #{residual_quantizer_forward.1} parent=5 // pred_check_branch
        %840 = sbr.rel (%p838) target = $region48
      $region47: #{residual_quantizer_forward.1} parent=5 // pred_region
        %s841 = ssub.s32 %s15, 2
        // Predicated region
        $region49: #{residual_quantizer_forward.1} parent=47 // pred_check
          %p842 = pneg %p112
        $region50: #{residual_quantizer_forward.1} parent=47 // pred_check_branch
          %844 = sbr.rel (%p842) target = $region52
        $region51: #{residual_quantizer_forward.1} parent=47 // pred_region
          %s845 = sand.u32 %s97, 1
          %s846 = scalar_lea.sflag [#allocation3], %s845
          %s847 = sand.u32 %s97, 1
          %s848 = smul.addr %s847, 8
          %s849 = scalar_lea.vmem [#allocation2], %s848
          %850 = dma.done %s846, 128
        $region52: #{residual_quantizer_forward.1} parent=47 // pred_fallthru
          _
        // Predicated region
        $region53: #{residual_quantizer_forward.1} parent=47 // pred_check
          %p851 = pneg %p138
        $region54: #{residual_quantizer_forward.1} parent=47 // pred_check_branch
          %853 = sbr.rel (%p851) target = $region56
        $region55: #{residual_quantizer_forward.1} parent=47 // pred_region
          %p854 = scmp.lt.s32.totalorder %s21, 1
          %s855 = scalar_select %p854, %s21, 1
          %s856 = smul.addr %s855, 8
          %s857 = scalar_lea.vmem %s4, %s856
        $region56: #{residual_quantizer_forward.1} parent=47 // pred_fallthru
          _
        // Predicated region
        $region57: #{residual_quantizer_forward.1} parent=47 // pred_check
          %p858 = pneg %p164
        $region58: #{residual_quantizer_forward.1} parent=47 // pred_check_branch
          %860 = sbr.rel (%p858) target = $region60
        $region59: #{residual_quantizer_forward.1} parent=47 // pred_region
          %p861 = scmp.lt.s32.totalorder %s21, 1
          %s862 = scalar_select %p861, %s21, 1
          %s863 = smul.addr %s862, 8
          %s864 = scalar_lea.vmem %s5, %s863
        $region60: #{residual_quantizer_forward.1} parent=47 // pred_fallthru
          _
      $region48: #{residual_quantizer_forward.1} parent=5 // pred_fallthru
        _
    $region6: #{residual_quantizer_forward.1} parent=1 // loop_footer
      %s19 = sadd.s32 1, %s15
    $region7: #{residual_quantizer_forward.1} parent=1 // loop_footer_branch
      %14 = sbr.rel target = $region3
    $region8: #{residual_quantizer_forward.1} parent=1 // loop_exit
      _
    %865 = vsyncpa [#allocation3], 1
    %s866 = scalar_lea.sflag [#allocation3], 1
    %867 = vsyncpa %s866, 1

</llo_original>
